<compile_context>
chip_gen: v6e
topology: v6e:2x2x1
jax: 0.10.0
libtpu: 0.0.40
codegen_flags: <defaults>
</compile_context>

<pallas_src>
import functools
import math

import jax
import jax.numpy as jnp
from jax.experimental import pallas as pl
from jax.experimental.pallas import tpu as pltpu


# ----------------------------- kernels ------------------------------------ #

def _rsoftmax_kernel(x_ref, o_ref, *, radix, cardinality, r):
    # x_ref / o_ref: (row_block, cardinality * radix * r) flat rows.
    #   input  column of (c, s, j) -> c * radix * r + s * r + j      (torch .view)
    #   output column of (s, c, j) -> s * cardinality * r + c * r + j (transpose + reshape)
    for c in range(cardinality):
        in_base = c * radix * r
        xs = [
            x_ref[:, in_base + s * r: in_base + (s + 1) * r].astype(jnp.float32)
            for s in range(radix)
        ]
        m = xs[0]
        for s in range(1, radix):
            m = jnp.maximum(m, xs[s])
        es = [jnp.exp(xv - m) for xv in xs]
        denom = es[0]
        for s in range(1, radix):
            denom = denom + es[s]
        inv = pl.reciprocal(denom, approx=True)
        inv = inv * (2.0 - denom * inv)          # one Newton step -> full f32 accuracy
        for s in range(radix):
            out_base = s * cardinality * r + c * r
            o_ref[:, out_base: out_base + r] = (es[s] * inv).astype(o_ref.dtype)


def _sigmoid_kernel(x_ref, o_ref):
    x = x_ref[...].astype(jnp.float32)
    denom = 1.0 + jnp.exp(-x)
    inv = pl.reciprocal(denom, approx=True)
    inv = inv * (2.0 - denom * inv)
    o_ref[...] = inv.astype(o_ref.dtype)


# ----------------------------- helpers ------------------------------------ #

def _pick_row_block(nrows, ncols, itemsize, target_bytes=1 << 20):
    """Rows per grid step: a multiple of 8 (sublane-dense) when possible, sized
    so one input block is ~target_bytes; double-buffered in+out then stays well
    inside the scoped-VMEM defaults on v5e/v6e and within v7x's 64 MiB VMEM."""
    if nrows <= 8:
        return nrows                           # block == full dim (always legal)
    rows = max(1, target_bytes // max(1, ncols * itemsize))
    rows = max(8, (rows // 8) * 8)
    return int(min(rows, (nrows // 8) * 8))


def _fold_2d(shape):
    """Free reshape of `shape` into (rows, cols): fold trailing dims into cols
    until cols >= 128 (lane-dense stores), remaining dims become rows."""
    dims = list(shape)
    cols = 1
    while dims and cols < 128:
        cols *= dims.pop()
    rows = 1
    for d in dims:
        rows *= d
    return rows, cols


# ----------------------------- wrapper ------------------------------------ #

def rsoftmax(x, radix, cardinality):
    """Pallas implementation of rSoftMax.forward.

    x: (B, C, H, W) array (NCHW, as in the PyTorch module).
    Returns:
      radix > 1 : (B, C*H*W) array (flattened in radix-major transposed order)
      radix == 1: (B, C, H, W) array (elementwise sigmoid)
    """
    batch = x.shape[0]
    n = math.prod(x.shape[1:])
    itemsize = jnp.dtype(x.dtype).itemsize

    if radix > 1:
        assert n % (cardinality * radix) == 0
        r = n // (cardinality * radix)

        x2 = x.reshape(batch, n)               # contiguous collapse; no data movement
        row_blk = _pick_row_block(batch, n, itemsize)
        grid = (pl.cdiv(batch, row_blk),)

        kernel = functools.partial(
            _rsoftmax_kernel, radix=radix, cardinality=cardinality, r=r)

        out = pl.pallas_call(
            kernel,
            out_shape=jax.ShapeDtypeStruct((batch, n), x.dtype),
            grid_spec=pltpu.PrefetchScalarGridSpec(
                num_scalar_prefetch=0,
                grid=grid,
                in_specs=[pl.BlockSpec((row_blk, n), lambda i: (i, 0))],
                out_specs=pl.BlockSpec((row_blk, n), lambda i: (i, 0)),
            ),
            compiler_params=pltpu.CompilerParams(
                dimension_semantics=("parallel",)),
        )(x2)
        return out                              # == torch's x.reshape(batch, -1)

    # radix == 1: elementwise sigmoid, original shape preserved.
    rows, cols = _fold_2d(x.shape)
    x2 = x.reshape(rows, cols)                  # free reshape, lane/sublane dense
    row_blk = _pick_row_block(rows, cols, itemsize)
    grid = (pl.cdiv(rows, row_blk),)
    out = pl.pallas_call(
        _sigmoid_kernel,
        out_shape=jax.ShapeDtypeStruct((rows, cols), x.dtype),
        grid_spec=pltpu.PrefetchScalarGridSpec(
            num_scalar_prefetch=0,
            grid=grid,
            in_specs=[pl.BlockSpec((row_blk, cols), lambda i: (i, 0))],
            out_specs=pl.BlockSpec((row_blk, cols), lambda i: (i, 0)),
        ),
        compiler_params=pltpu.CompilerParams(
            dimension_semantics=("parallel",)),
    )(x2)
    return out.reshape(x.shape)


# Pure-JAX reference mirroring the PyTorch forward, for correctness check.
def rsoftmax_ref(x, radix, cardinality):
    batch = x.shape[0]
    if radix > 1:
        xr = x.reshape(batch, cardinality, radix, -1)
        xr = jnp.transpose(xr, (0, 2, 1, 3))
        xr = jax.nn.softmax(xr, axis=1)
        return xr.reshape(batch, -1)
    else:
        return jax.nn.sigmoid(x)


# ------------------------------- main -------------------------------------- #

if __name__ == "__main__":
    # rSoftMax has no learnable parameters; only radix / cardinality config.
    radix, cardinality = 2, 2
    B, C, H, W = 2, 4, 16, 16          # C*H*W = 1024 -> r = 256 (lane-aligned slices)

    key = jax.random.PRNGKey(0)
    x = jax.random.normal(key, (B, C, H, W), dtype=jnp.float32)

    out = jax.block_until_ready(rsoftmax(x, radix, cardinality))
    ref = rsoftmax_ref(x, radix, cardinality)
    assert out.shape == ref.shape == (B, C * H * W)
    assert jnp.allclose(out, ref, atol=1e-5, rtol=1e-5)

    # Also exercise the radix == 1 (sigmoid) branch.
    out1 = jax.block_until_ready(rsoftmax(x, 1, cardinality))
    ref1 = rsoftmax_ref(x, 1, cardinality)
    assert out1.shape == ref1.shape == x.shape
    assert jnp.allclose(out1, ref1, atol=1e-5, rtol=1e-5)

    print("KERNEL_OK")
</pallas_src>

<mosaic_0001>
module attributes {stable_mosaic.version = 11 : i64} {
  func.func @_rsoftmax_kernel(%arg0: i32, %arg1: memref<2x1024xf32, #tpu.memory_space<vmem>>, %arg2: memref<2x1024xf32, #tpu.memory_space<vmem>>) attributes {dimension_semantics = [#tpu.dimension_semantics<parallel>], iteration_bounds = array<i64: 1>, scalar_prefetch = 0 : i64, scratch_operands = 0 : i64, tpu.core_type = #tpu.core_type<tc>, window_params = [{transform_indices = @transform_0, window_bounds = array<i64: 2, 1024>}, {transform_indices = @transform_1, window_bounds = array<i64: 2, 1024>}]} {
    %c0 = arith.constant 0 : index
    %c0_0 = arith.constant 0 : index
    %0 = vector.load %arg1[%c0, %c0_0] : memref<2x1024xf32, #tpu.memory_space<vmem>>, vector<2x256xf32>
    %c0_1 = arith.constant 0 : index
    %c256 = arith.constant 256 : index
    %1 = vector.load %arg1[%c0_1, %c256] : memref<2x1024xf32, #tpu.memory_space<vmem>>, vector<2x256xf32>
    %2 = arith.maximumf %0, %1 : vector<2x256xf32>
    %3 = arith.subf %0, %2 : vector<2x256xf32>
    %4 = math.exp %3 : vector<2x256xf32>
    %5 = arith.subf %1, %2 : vector<2x256xf32>
    %6 = math.exp %5 : vector<2x256xf32>
    %7 = arith.addf %4, %6 : vector<2x256xf32>
    %8 = tpu.reciprocal %7 {approx = true} : vector<2x256xf32> -> vector<2x256xf32>
    %9 = arith.mulf %7, %8 : vector<2x256xf32>
    %cst = arith.constant 2.000000e+00 : f32
    %10 = vector.broadcast %cst : f32 to vector<2x256xf32>
    %11 = arith.subf %10, %9 : vector<2x256xf32>
    %12 = arith.mulf %8, %11 : vector<2x256xf32>
    %13 = arith.mulf %4, %12 : vector<2x256xf32>
    %c0_2 = arith.constant 0 : index
    %c0_3 = arith.constant 0 : index
    %14 = vector.load %arg2[%c0_2, %c0_3] : memref<2x1024xf32, #tpu.memory_space<vmem>>, vector<2x256xf32>
    tpu.vector_store %arg2[%c0_2, %c0_3], %13 {strides = array<i32>} : memref<2x1024xf32, #tpu.memory_space<vmem>>, vector<2x256xf32>,
    %15 = arith.mulf %6, %12 : vector<2x256xf32>
    %c0_4 = arith.constant 0 : index
    %c512 = arith.constant 512 : index
    %16 = vector.load %arg2[%c0_4, %c512] : memref<2x1024xf32, #tpu.memory_space<vmem>>, vector<2x256xf32>
    tpu.vector_store %arg2[%c0_4, %c512], %15 {strides = array<i32>} : memref<2x1024xf32, #tpu.memory_space<vmem>>, vector<2x256xf32>,
    %c0_5 = arith.constant 0 : index
    %c512_6 = arith.constant 512 : index
    %17 = vector.load %arg1[%c0_5, %c512_6] : memref<2x1024xf32, #tpu.memory_space<vmem>>, vector<2x256xf32>
    %c0_7 = arith.constant 0 : index
    %c768 = arith.constant 768 : index
    %18 = vector.load %arg1[%c0_7, %c768] : memref<2x1024xf32, #tpu.memory_space<vmem>>, vector<2x256xf32>
    %19 = arith.maximumf %17, %18 : vector<2x256xf32>
    %20 = arith.subf %17, %19 : vector<2x256xf32>
    %21 = math.exp %20 : vector<2x256xf32>
    %22 = arith.subf %18, %19 : vector<2x256xf32>
    %23 = math.exp %22 : vector<2x256xf32>
    %24 = arith.addf %21, %23 : vector<2x256xf32>
    %25 = tpu.reciprocal %24 {approx = true} : vector<2x256xf32> -> vector<2x256xf32>
    %26 = arith.mulf %24, %25 : vector<2x256xf32>
    %cst_8 = arith.constant 2.000000e+00 : f32
    %27 = vector.broadcast %cst_8 : f32 to vector<2x256xf32>
    %28 = arith.subf %27, %26 : vector<2x256xf32>
    %29 = arith.mulf %25, %28 : vector<2x256xf32>
    %30 = arith.mulf %21, %29 : vector<2x256xf32>
    %c0_9 = arith.constant 0 : index
    %c256_10 = arith.constant 256 : index
    %31 = vector.load %arg2[%c0_9, %c256_10] : memref<2x1024xf32, #tpu.memory_space<vmem>>, vector<2x256xf32>
    tpu.vector_store %arg2[%c0_9, %c256_10], %30 {strides = array<i32>} : memref<2x1024xf32, #tpu.memory_space<vmem>>, vector<2x256xf32>,
    %32 = arith.mulf %23, %29 : vector<2x256xf32>
    %c0_11 = arith.constant 0 : index
    %c768_12 = arith.constant 768 : index
    %33 = vector.load %arg2[%c0_11, %c768_12] : memref<2x1024xf32, #tpu.memory_space<vmem>>, vector<2x256xf32>
    tpu.vector_store %arg2[%c0_11, %c768_12], %32 {strides = array<i32>} : memref<2x1024xf32, #tpu.memory_space<vmem>>, vector<2x256xf32>,
    return
  }
  func.func @transform_0(%arg0: i32) -> (i32, i32) {
    %c0_i32 = arith.constant 0 : i32
    %c0_i32_0 = arith.constant 0 : i32
    return %arg0, %c0_i32 : i32, i32
  }
  func.func @transform_1(%arg0: i32) -> (i32, i32) {
    %c0_i32 = arith.constant 0 : i32
    %c0_i32_0 = arith.constant 0 : i32
    return %arg0, %c0_i32 : i32, i32
  }
}

</mosaic_0001>

<llo_original>
// kernel: tpu_custom_call.1
$region0: #{tpu_custom_call.1}
  #allocation0 [shape = 'u32[]', space=smem, size = 0x4, offset = 0x4, fixed_abs, tag = 'smem constant byte address 0x4 - core index']
  #allocation1 [shape = 'u32[144,128]{1,0:T(1,128)}', space=vmem, size = 0x12000, scoped, tag = 'internal scratch']
  %s0 = inlined_call_operand.hbm [shape: f32[2,1024], index: 0, kind: input, shape index: {}]
  %s1 = inlined_call_operand.hbm [shape: f32[2,1024], index: 1, kind: output, shape index: {}]
  %s2 = sld [smem:[#allocation0]]
  $region18: #{tpu_custom_call.1} parent=0
    _
  %s4 = ssub.s32 1, %s2
  %s5 = scalar_select 0, %s4, %s2
  $region1: #{tpu_custom_call.1} parent=0
    #allocation2 [shape = 'u8[8192]{0}', space=vmem, size = 0x2000, scoped, tag = 'input window, operand 0, single buffered']
    #allocation3 [shape = 's32[1]{0}', space=sflag, size = 0x4, scoped, tag = 'scoped memory for tpu_custom_call.1']
    #allocation4 [shape = 's32[1]{0}', space=sflag, size = 0x4, scoped, tag = 'scoped memory for tpu_custom_call.1']
    #allocation5 [shape = 'u8[8192]{0}', space=vmem, size = 0x2000, scoped, tag = 'output window, operand 0, single buffered']
    %6 = vsyncpa [#allocation3], 0
    %7 = vsyncpa [#allocation4], 0
    // Predicated region
    $region2: #{tpu_custom_call.1} parent=1 // pred_check
      _
    $region3: #{tpu_custom_call.1} parent=1 // pred_check_branch
      %9 = sbr.rel (0) target = $region5
    $region4: #{tpu_custom_call.1} parent=1 // pred_region
      %s11 = ssub.s32 256, 256
      %12 = vsyncadd [#allocation3], %s11
      %s14 = sshll.u32 [#allocation2], 4
      %s15 = int_to_ptr.vmem [resolvable:$true] %s14
      %17 = dma.hbm_to_vmem [thread:$0]  %s0, 256, %s15, [#allocation3]
    $region5: #{tpu_custom_call.1} parent=1 // pred_fallthru
      _
    // Predicated region
    $region6: #{tpu_custom_call.1} parent=1 // pred_check
      _
    $region7: #{tpu_custom_call.1} parent=1 // pred_check_branch
      %19 = sbr.rel (0) target = $region9
    $region8: #{tpu_custom_call.1} parent=1 // pred_region
      %20 = dma.done [#allocation3], 256
    $region9: #{tpu_custom_call.1} parent=1 // pred_fallthru
      _
    %v21 = vld [vmem:[#allocation2] sm:$0xf]
    %v22 = vld [vmem:[#allocation2 + $0x4] sm:$0xf]
    %v23 = vmax.f32 %v21, %v22
    %v24 = vsub.f32 %v21, %v23
    %v25 = vmul.f32 %v24, 1.442695
    %v26 = vpow.pop %v25
    %v27 = vsub.f32 %v22, %v23
    %v28 = vmul.f32 %v27, 1.442695
    %v29 = vpow.pop %v28
    %v30 = vadd.f32 %v26, %v29
    %v31 = vrcp.pop %v30
    %v32 = vmul.f32 %v30, %v31
    %v33 = vsub.f32 2.0, %v32
    %v34 = vmul.f32 %v31, %v33
    %v35 = vmul.f32 %v26, %v34
    %36 = vst [vmem:[#allocation5] sm:$0xf] %v35
    %v37 = vmul.f32 %v29, %v34
    %38 = vst [vmem:[#allocation5 + $0x8] sm:$0xf] %v37
    %v39 = vld [vmem:[#allocation2 + $0x8] sm:$0xf]
    %v40 = vld [vmem:[#allocation2 + $0xc] sm:$0xf]
    %v41 = vmax.f32 %v39, %v40
    %v42 = vsub.f32 %v39, %v41
    %v43 = vmul.f32 %v42, 1.442695
    %v44 = vpow.pop %v43
    %v45 = vsub.f32 %v40, %v41
    %v46 = vmul.f32 %v45, 1.442695
    %v47 = vpow.pop %v46
    %v48 = vadd.f32 %v44, %v47
    %v49 = vrcp.pop %v48
    %v50 = vmul.f32 %v48, %v49
    %v51 = vsub.f32 2.0, %v50
    %v52 = vmul.f32 %v49, %v51
    %v53 = vmul.f32 %v44, %v52
    %54 = vst [vmem:[#allocation5 + $0x4] sm:$0xf] %v53
    %v55 = vmul.f32 %v47, %v52
    %56 = vst [vmem:[#allocation5 + $0xc] sm:$0xf] %v55
    // Predicated region
    $region10: #{tpu_custom_call.1} parent=1 // pred_check
      _
    $region11: #{tpu_custom_call.1} parent=1 // pred_check_branch
      %58 = sbr.rel (0) target = $region13
    $region12: #{tpu_custom_call.1} parent=1 // pred_region
      %s60 = ssub.s32 256, 256
      %61 = vsyncadd [#allocation4], %s60
      %s63 = sshll.u32 [#allocation5], 4
      %s64 = int_to_ptr.vmem [resolvable:$true] %s63
      %66 = dma.vmem_to_hbm [thread:$0]  %s64, 256, %s1, [#allocation4]
    $region13: #{tpu_custom_call.1} parent=1 // pred_fallthru
      _
    // Predicated region
    $region14: #{tpu_custom_call.1} parent=1 // pred_check
      _
    $region15: #{tpu_custom_call.1} parent=1 // pred_check_branch
      %68 = sbr.rel (0) target = $region17
    $region16: #{tpu_custom_call.1} parent=1 // pred_region
      %69 = dma.done [#allocation4], 256
    $region17: #{tpu_custom_call.1} parent=1 // pred_fallthru
      _
    %70 = vsyncpa [#allocation3], 1
    %71 = vsyncpa [#allocation4], 1

</llo_original>
